<compile_context>
chip_gen: v6e
topology: v6e:2x2x1
jax: 0.10.0
libtpu: 0.0.40
codegen_flags: <defaults>
</compile_context>

<pallas_src>
import jax
import jax.numpy as jnp
from jax.experimental import pallas as pl
from jax.experimental.pallas import tpu as pltpu

_SUBLANES = 8
_NEG = -1e30  # acts as -inf for logsumexp padding; representable in bf16/f32


def _ce_kernel(tgt_ref, x_ref, out_ref):
    """out[0,0] = logsumexp(x) - x[target], with x the (8, C) logits tile.

    tgt_ref: SMEM (1,) int32 scalar-prefetch ref holding the flat target id.
    x_ref  : VMEM (8, C) logits tile (caller dtype; upcast to f32 here).
    """
    x = x_ref[...].astype(jnp.float32)                  # (8, C) tile in vregs
    rows, cols = x.shape                                # static Python ints

    # --- logsumexp: lane reduce then sublane reduce -> (1, 1) ---------------
    m = jnp.max(jnp.max(x, axis=1, keepdims=True), axis=0, keepdims=True)
    s = jnp.sum(jnp.sum(jnp.exp(x - m), axis=1, keepdims=True),
                axis=0, keepdims=True)
    lse = m + jnp.log(s)                                # (1, 1)

    # --- fused target gather: flat-index mask over the resident tile --------
    t = tgt_ref[0]                                      # SMEM scalar read
    row_ids = jax.lax.broadcasted_iota(jnp.int32, (rows, cols), 0)
    col_ids = jax.lax.broadcasted_iota(jnp.int32, (rows, cols), 1)
    flat_ids = row_ids * cols + col_ids                 # row-major flat index
    picked = jnp.where(flat_ids == t, x, 0.0)           # target < V, never pad
    tgt_logit = jnp.sum(jnp.sum(picked, axis=1, keepdims=True),
                        axis=0, keepdims=True)          # (1, 1)

    out_ref[...] = lse - tgt_logit


def cross_entropy_pallas(logits_1d, target_id):
    """CE(logits, target) = logsumexp(logits) - logits[target] -> f32 scalar.

    Single pallas_call: logsumexp and the target gather are fused so the
    logits are read from HBM exactly once.
    """
    V = logits_1d.shape[0]
    dtype = logits_1d.dtype  # keep HBM ingress in the caller's dtype (bf16 OK)

    # Pad only if V is not a multiple of 8 so it reshapes into full sublanes.
    pad = (-V) % _SUBLANES
    x = logits_1d
    if pad:
        x = jnp.concatenate([x, jnp.full((pad,), _NEG, dtype=dtype)])
    C = (V + pad) // _SUBLANES
    x2d = x.reshape(_SUBLANES, C)  # row-major reshape: free, lane-dense last dim

    tgt = jnp.asarray(target_id, dtype=jnp.int32).reshape((1,))

    # Single-block kernel. Note: a vocab larger than VMEM (many millions of
    # entries) would need a tiled/streaming variant; real tokenizers never get
    # close, so we keep the zero-overhead single-block form.
    out = pl.pallas_call(
        _ce_kernel,
        out_shape=jax.ShapeDtypeStruct((1, 1), jnp.float32),
        grid_spec=pltpu.PrefetchScalarGridSpec(
            num_scalar_prefetch=1,
            grid=(1,),
            in_specs=[pl.BlockSpec((_SUBLANES, C), lambda i, tgt: (0, 0))],
            out_specs=pl.BlockSpec((1, 1), lambda i, tgt: (0, 0)),
        ),
        compiler_params=pltpu.CompilerParams(
            dimension_semantics=("arbitrary",)),
    )(tgt, x2d)
    return out[0, 0]


def tea_loss_forward(input_ids, attention_mask, first_token_logits,
                     time_token_id, id_token_id):
    """Pallas-backed TEALoss.forward.

    input_ids / attention_mask are accepted for signature parity but unused by
    the reproducible compute (matching the PyTorch module, which only uses
    model_output[0] and the token ids).
    """
    del input_ids, attention_mask, id_token_id
    time_loss = cross_entropy_pallas(first_token_logits, time_token_id)
    # TODO(synk): the `if id_token_id in model_output` branch in the PyTorch
    # code references an undefined name and indexes a 1-D tensor as 2-D; it is
    # not executable semantics, so id_loss stays 0.0 as in the default path.
    id_loss = jnp.float32(0.0)
    total_loss = time_loss + id_loss
    return total_loss


if __name__ == "__main__":
    key = jax.random.PRNGKey(0)
    k1, k2, k3 = jax.random.split(key, 3)

    B, S = 2, 8          # input_ids / attention_mask shapes (unused by loss)
    V = 512              # small synthetic vocab

    input_ids = jax.random.randint(k1, (B, S), 0, V, dtype=jnp.int32)
    attention_mask = jnp.ones((B, S), dtype=jnp.int32)
    first_token_logits = jax.random.normal(k2, (V,), dtype=jnp.float32)

    # Deterministic "tokenizer" ids (synthetic; no checkpoint / tokenizer load).
    time_token_id = jnp.int32(7)
    id_token_id = jnp.int32(11)

    loss_fn = jax.jit(tea_loss_forward)
    total = loss_fn(input_ids, attention_mask, first_token_logits,
                    time_token_id, id_token_id)
    total = jax.block_until_ready(total)

    # Sanity check against a plain-JAX reference of the same math.
    ref = (jax.scipy.special.logsumexp(first_token_logits)
           - first_token_logits[time_token_id])
    assert jnp.allclose(total, ref, rtol=1e-5, atol=1e-5), (total, ref)

    # Ragged-vocab path (V not a multiple of 8) exercises the pad branch.
    V2 = 300
    logits2 = jax.random.normal(k3, (V2,), dtype=jnp.float32)
    out2 = jax.block_until_ready(cross_entropy_pallas(logits2, jnp.int32(123)))
    ref2 = jax.scipy.special.logsumexp(logits2) - logits2[123]
    assert jnp.allclose(out2, ref2, rtol=1e-5, atol=1e-5), (out2, ref2)

    # bf16 ingress path (halved DMA bytes, f32 math inside the kernel).
    logits_bf16 = first_token_logits.astype(jnp.bfloat16)
    out3 = jax.block_until_ready(cross_entropy_pallas(logits_bf16, time_token_id))
    ref3 = (jax.scipy.special.logsumexp(logits_bf16.astype(jnp.float32))
            - logits_bf16[time_token_id].astype(jnp.float32))
    assert jnp.allclose(out3, ref3, rtol=1e-2, atol=1e-2), (out3, ref3)

    print("KERNEL_OK")
</pallas_src>

<mosaic_0001>
module attributes {stable_mosaic.version = 11 : i64} {
  func.func @_ce_kernel(%arg0: i32, %arg1: memref<1xi32, #tpu.memory_space<smem>>, %arg2: memref<8x64xf32, #tpu.memory_space<vmem>>, %arg3: memref<1x1xf32, #tpu.memory_space<vmem>>) attributes {dimension_semantics = [#tpu.dimension_semantics<arbitrary>], iteration_bounds = array<i64: 1>, scalar_prefetch = 1 : i64, scratch_operands = 0 : i64, tpu.core_type = #tpu.core_type<tc>, window_params = [{pipeline_mode = #tpu.pipeline_mode<synchronous>, transform_indices = @transform_0, window_bounds = array<i64: 8, 64>}, {pipeline_mode = #tpu.pipeline_mode<synchronous>, transform_indices = @transform_1, window_bounds = array<i64: 1, 1>}]} {
    %c0 = arith.constant 0 : index
    %c0_0 = arith.constant 0 : index
    %0 = vector.load %arg2[%c0, %c0_0] : memref<8x64xf32, #tpu.memory_space<vmem>>, vector<8x64xf32>
    %cst = arith.constant dense<0xFF800000> : vector<8xf32>
    %1 = vector.multi_reduction <maximumf>, %0, %cst [1] : vector<8x64xf32> to vector<8xf32>
    %2 = vector.shape_cast %1 : vector<8xf32> to vector<8x1xf32>
    %cst_1 = arith.constant dense<0xFF800000> : vector<1xf32>
    %3 = vector.multi_reduction <maximumf>, %2, %cst_1 [0] : vector<8x1xf32> to vector<1xf32>
    %4 = vector.shape_cast %3 : vector<1xf32> to vector<1x1xf32>
    %5 = vector.broadcast %4 : vector<1x1xf32> to vector<8x64xf32>
    %6 = arith.subf %0, %5 : vector<8x64xf32>
    %7 = math.exp %6 : vector<8x64xf32>
    %cst_2 = arith.constant dense<0.000000e+00> : vector<8xf32>
    %8 = vector.multi_reduction <add>, %7, %cst_2 [1] : vector<8x64xf32> to vector<8xf32>
    %9 = vector.shape_cast %8 : vector<8xf32> to vector<8x1xf32>
    %cst_3 = arith.constant dense<0.000000e+00> : vector<1xf32>
    %10 = vector.multi_reduction <add>, %9, %cst_3 [0] : vector<8x1xf32> to vector<1xf32>
    %11 = vector.shape_cast %10 : vector<1xf32> to vector<1x1xf32>
    %12 = math.log %11 : vector<1x1xf32>
    %13 = arith.addf %4, %12 : vector<1x1xf32>
    %c0_4 = arith.constant 0 : index
    %14 = memref.load %arg1[%c0_4] : memref<1xi32, #tpu.memory_space<smem>>
    %15 = tpu.iota {dimensions = array<i32: 0>} : vector<8x64xi32>
    %16 = tpu.iota {dimensions = array<i32: 1>} : vector<8x64xi32>
    %c64_i32 = arith.constant 64 : i32
    %17 = vector.broadcast %c64_i32 : i32 to vector<8x64xi32>
    %18 = arith.muli %15, %17 : vector<8x64xi32>
    %19 = arith.addi %18, %16 : vector<8x64xi32>
    %20 = vector.broadcast %14 : i32 to vector<8x64xi32>
    %21 = arith.cmpi eq, %19, %20 : vector<8x64xi32>
    %cst_5 = arith.constant 0.000000e+00 : f32
    %22 = vector.broadcast %cst_5 : f32 to vector<8x64xf32>
    %23 = arith.select %21, %0, %22 : vector<8x64xi1>, vector<8x64xf32>
    %cst_6 = arith.constant dense<0.000000e+00> : vector<8xf32>
    %24 = vector.multi_reduction <add>, %23, %cst_6 [1] : vector<8x64xf32> to vector<8xf32>
    %25 = vector.shape_cast %24 : vector<8xf32> to vector<8x1xf32>
    %cst_7 = arith.constant dense<0.000000e+00> : vector<1xf32>
    %26 = vector.multi_reduction <add>, %25, %cst_7 [0] : vector<8x1xf32> to vector<1xf32>
    %27 = vector.shape_cast %26 : vector<1xf32> to vector<1x1xf32>
    %28 = arith.subf %13, %27 : vector<1x1xf32>
    %c0_8 = arith.constant 0 : index
    %c0_9 = arith.constant 0 : index
    %29 = vector.load %arg3[%c0_8, %c0_9] : memref<1x1xf32, #tpu.memory_space<vmem>>, vector<1x1xf32>
    tpu.vector_store %arg3[%c0_8, %c0_9], %28 {strides = array<i32>} : memref<1x1xf32, #tpu.memory_space<vmem>>, vector<1x1xf32>,
    return
  }
  func.func @transform_0(%arg0: i32, %arg1: memref<1xi32, #tpu.memory_space<smem>>) -> (i32, i32) {
    %c0_i32 = arith.constant 0 : i32
    %c0_i32_0 = arith.constant 0 : i32
    %c0_i32_1 = arith.constant 0 : i32
    return %c0_i32, %c0_i32_0 : i32, i32
  }
  func.func @transform_1(%arg0: i32, %arg1: memref<1xi32, #tpu.memory_space<smem>>) -> (i32, i32) {
    %c0_i32 = arith.constant 0 : i32
    %c0_i32_0 = arith.constant 0 : i32
    %c0_i32_1 = arith.constant 0 : i32
    return %c0_i32, %c0_i32_0 : i32, i32
  }
}

</mosaic_0001>

<llo_original>
// kernel: tea_loss_forward.1
$region0: #{tea_loss_forward.1}
  #allocation0 [shape = 'u32[]', space=smem, size = 0x4, offset = 0x4, fixed_abs, tag = 'smem constant byte address 0x4 - core index']
  #allocation1 [shape = 'u32[144,128]{1,0:T(1,128)}', space=vmem, size = 0x12000, scoped, tag = 'internal scratch']
  #allocation2 [shape = 's32[1]{0}', space=sflag, size = 0x4, scoped, tag = 'scoped memory for tea_loss_forward.1']
  #allocation3 [shape = 's32[1]{0:T(128)S(6)}', space=smem, size = 0x200, scoped, tag = 'prefetched SMEM operand 0']
  %s0 = inlined_call_operand.<no memory space> [shape: s32[1], index: 0, kind: input, shape index: {}]
  %s1 = inlined_call_operand.vmem [shape: f32[8,64], index: 1, kind: input, shape index: {}]
  %s2 = inlined_call_operand.hbm [shape: f32[1,1], index: 2, kind: output, shape index: {}]
  %s3 = sld [smem:[#allocation0]]
  $region14: #{tea_loss_forward.1} parent=0
    _
  %s5 = ssub.s32 1, %s3
  %s6 = scalar_select 0, %s5, %s3
  %7 = sst [smem:[#allocation3]] %s0
  $region1: #{tea_loss_forward.1} parent=0
    #allocation4 [shape = 'u8[512]{0}', space=vmem, size = 0x400, scoped, tag = 'output window, operand 0, single buffered']
    #allocation5 [shape = 's32[1]{0}', space=sflag, size = 0x4, scoped, tag = 'scoped memory for tea_loss_forward.1']
    %8 = vsyncpa [#allocation5], 0
    // Predicated region
    $region2: #{tea_loss_forward.1} parent=1 // pred_check
      _
    $region3: #{tea_loss_forward.1} parent=1 // pred_check_branch
      %10 = sbr.rel (0) target = $region5
    $region4: #{tea_loss_forward.1} parent=1 // pred_region
      _
    $region5: #{tea_loss_forward.1} parent=1 // pred_fallthru
      _
    %v11 = vld [vmem:[%s1] sm:$0xff]
    %vm12 = vcmask 523264
    %v13 = vsel %vm12, %v11, -inf
    %14 = vmax.xlane.f32.xlu0 %v13
    %v15 = vpop.xlane.xlu0 %14
    %v16 = vrot.slane %v15, 4
    %v17 = vmax.f32 %v15, %v16
    %v18 = vrot.slane %v17, 2
    %v19 = vmax.f32 %v17, %v18
    %v20 = vrot.slane %v19, 1
    %v21 = vmax.f32 %v19, %v20
    %v22 = vsub.f32 %v11, %v21
    %v23 = vmul.f32 %v22, 1.442695
    %v24 = vpow.pop %v23
    %v25 = vsel %vm12, %v24, 0.0
    %26 = vadd.xlane.f32.xlu0 %v25
    %v27 = vpop.xlane.xlu0 %26
    %v28 = vrot.slane %v27, 4
    %v29 = vadd.f32 %v27, %v28
    %v30 = vrot.slane %v29, 2
    %v31 = vadd.f32 %v29, %v30
    %v32 = vrot.slane %v31, 1
    %v33 = vadd.f32 %v31, %v32
    %v34 = vlog2.pop %v33
    %v35 = vmul.f32 %v34, 0.6931472
    %v36 = vadd.f32 %v21, %v35
    %s37 = sld [smem:[#allocation3]]
    %v38 = vlaneseq
    %v39 = vshrl.u32 %v38, 7
    %v40 = vlaneseq
    %v41 = vand.u32 %v40, 127
    %v42 = vmul.u32 %v39, 64
    %v43 = vadd.s32 %v42, %v41
    %v44 = vstv %s37
    %vm45 = vcmp.eq.s32.totalorder %v43, %v44
    %v46 = vsel %vm45, %v11, 0.0
    %v47 = vsel %vm12, %v46, 0.0
    %48 = vadd.xlane.f32.xlu0 %v47
    %v49 = vpop.xlane.xlu0 %48
    %v50 = vrot.slane %v49, 4
    %v51 = vadd.f32 %v49, %v50
    %v52 = vrot.slane %v51, 2
    %v53 = vadd.f32 %v51, %v52
    %v54 = vrot.slane %v53, 1
    %v55 = vadd.f32 %v53, %v54
    %v56 = vsub.f32 %v36, %v55
    %vm57 = vcmask 0
    %58 = vst.msk [vmem:[#allocation4] sm:$0x1] %vm57, %v56
    // Predicated region
    $region6: #{tea_loss_forward.1} parent=1 // pred_check
      _
    $region7: #{tea_loss_forward.1} parent=1 // pred_check_branch
      %60 = sbr.rel (0) target = $region9
    $region8: #{tea_loss_forward.1} parent=1 // pred_region
      %s62 = ssub.s32 16, 16
      %63 = vsyncadd [#allocation5], %s62
      %s65 = sshll.u32 [#allocation4], 4
      %s66 = int_to_ptr.vmem [resolvable:$true] %s65
      %68 = dma.vmem_to_hbm [thread:$0]  %s66, 16, %s2, [#allocation5]
    $region9: #{tea_loss_forward.1} parent=1 // pred_fallthru
      _
    // Predicated region
    $region10: #{tea_loss_forward.1} parent=1 // pred_check
      _
    $region11: #{tea_loss_forward.1} parent=1 // pred_check_branch
      %70 = sbr.rel (0) target = $region13
    $region12: #{tea_loss_forward.1} parent=1 // pred_region
      %71 = dma.done [#allocation5], 16
    $region13: #{tea_loss_forward.1} parent=1 // pred_fallthru
      _
    %72 = vsyncpa [#allocation5], 1

</llo_original>
